<compile_context>
chip_gen: v7x
topology: tpu7x:2x2x1
jax: 0.10.0
libtpu: 0.0.40
codegen_flags: <defaults>
</compile_context>

<pallas_src>
import jax
import jax.numpy as jnp
from jax.experimental import pallas as pl
from jax.experimental.pallas import tpu as pltpu


def _copy_kernel(x_ref, o_ref):
    # Whole-block copy: x_ref and o_ref are both (TH2, W2, NC) slabs; the 2x2
    # phase reordering is expressed entirely in the BlockSpec index_maps.
    o_ref[...] = x_ref[...]


def _pick_row_tile(h2, row_bytes, budget_bytes=2 * 1024 * 1024):
    """Largest divisor of h2 whose (TH2, W2, NC) block stays under the budget.

    ~2 MiB per block => ~8 MiB with double-buffered in+out blocks, well under the
    default scoped VMEM limits on v5e/v6e/v7x.
    """
    best = 1
    for cand in range(1, h2 + 1):
        if h2 % cand == 0 and cand * row_bytes <= budget_bytes:
            best = cand
    return best


@jax.jit
def downsample_group_stack(x):
    """x: (N, C, H, W) -> (N, 4*C, H//2, W//2), pixel_unshuffle(r=2) ordering."""
    n, c, hh, ww = x.shape
    assert hh % 2 == 0 and ww % 2 == 0, "spatial dims must be even"
    h2, w2 = hh // 2, ww // 2
    nc = n * c

    # --- layout glue (XLA): NCHW -> channels-last (H2, 2, 2, W2, NC).
    # xk[h2, i, j, w2, n*C + c] == x[n, c, 2*h2 + i, 2*w2 + j]
    x6 = x.reshape(n, c, h2, 2, w2, 2)
    xk = jnp.transpose(x6, (2, 3, 5, 4, 0, 1)).reshape(h2, 2, 2, w2, nc)

    th2 = _pick_row_tile(h2, w2 * nc * x.dtype.itemsize)

    out = pl.pallas_call(
        _copy_kernel,
        out_shape=jax.ShapeDtypeStruct((2, 2, h2, w2, nc), x.dtype),
        grid=(2, 2, h2 // th2),
        in_specs=[
            # Phase dims (i, j) are leading dims selected purely by the index_map;
            # last two block dims are the full (W2, NC) => legal and lane-dense.
            pl.BlockSpec((th2, None, None, w2, nc),
                         lambda i, j, ht: (ht, i, j, 0, 0)),
        ],
        out_specs=pl.BlockSpec((None, None, th2, w2, nc),
                               lambda i, j, ht: (i, j, ht, 0, 0)),
        compiler_params=pltpu.CompilerParams(
            dimension_semantics=("parallel", "parallel", "parallel")),
    )(xk)

    # --- layout glue (XLA): (2, 2, H2, W2, N, C) -> (N, 4C, H2, W2).
    # Channel index becomes c*4 + i*2 + j (pixel_unshuffle ordering).
    y = jnp.transpose(out.reshape(2, 2, h2, w2, n, c), (4, 5, 0, 1, 2, 3))
    return y.reshape(n, 4 * c, h2, w2)


def _reference_downsample_group_stack(x):
    # Pure-JAX reference (same semantics), for correctness checking.
    n, c, hh, ww = x.shape
    xr = x.reshape(n, c, hh // 2, 2, ww // 2, 2)
    return jnp.transpose(xr, (0, 1, 3, 5, 2, 4)).reshape(n, 4 * c, hh // 2, ww // 2)


class SampleGroupStackModule:
    """JAX/Pallas port of tlkit SampleGroupStackModule (parameter-free)."""

    def __call__(self, *args, **kwargs):
        return downsample_group_stack(*args, **kwargs)


if __name__ == "__main__":
    key = jax.random.PRNGKey(0)
    x = jax.random.normal(key, (2, 4, 16, 16), dtype=jnp.float32)  # NCHW

    module = SampleGroupStackModule()
    y = jax.block_until_ready(module(x))

    assert y.shape == (2, 16, 8, 8), y.shape
    y_ref = _reference_downsample_group_stack(x)
    # Pure permutation of the input -> must be bit-exact.
    assert bool(jnp.array_equal(y, y_ref)), "Pallas kernel mismatch vs reference"

    print("KERNEL_OK")
</pallas_src>

<mosaic_0001>
module attributes {stable_mosaic.version = 11 : i64} {
  func.func @_copy_kernel(%arg0: i32, %arg1: i32, %arg2: i32, %arg3: memref<8x1x1x8x8xf32, #tpu.memory_space<vmem>>, %arg4: memref<1x1x8x8x8xf32, #tpu.memory_space<vmem>>) attributes {dimension_semantics = [#tpu.dimension_semantics<parallel>, #tpu.dimension_semantics<parallel>, #tpu.dimension_semantics<parallel>], iteration_bounds = array<i64: 2, 2, 1>, scalar_prefetch = 0 : i64, scratch_operands = 0 : i64, tpu.core_type = #tpu.core_type<tc>, window_params = [{transform_indices = @transform_0, window_bounds = array<i64: 8, 1, 1, 8, 8>}, {transform_indices = @transform_1, window_bounds = array<i64: 1, 1, 8, 8, 8>}]} {
    %c0 = arith.constant 0 : index
    %c0_0 = arith.constant 0 : index
    %c0_1 = arith.constant 0 : index
    %c0_2 = arith.constant 0 : index
    %c0_3 = arith.constant 0 : index
    %0 = vector.load %arg3[%c0, %c0_0, %c0_1, %c0_2, %c0_3] : memref<8x1x1x8x8xf32, #tpu.memory_space<vmem>>, vector<8x1x1x8x8xf32>
    %1 = vector.shape_cast %0 : vector<8x1x1x8x8xf32> to vector<8x8x8xf32>
    %c0_4 = arith.constant 0 : index
    %c0_5 = arith.constant 0 : index
    %c0_6 = arith.constant 0 : index
    %c0_7 = arith.constant 0 : index
    %c0_8 = arith.constant 0 : index
    %2 = vector.load %arg4[%c0_4, %c0_5, %c0_6, %c0_7, %c0_8] : memref<1x1x8x8x8xf32, #tpu.memory_space<vmem>>, vector<1x1x8x8x8xf32>
    %3 = vector.shape_cast %2 : vector<1x1x8x8x8xf32> to vector<8x8x8xf32>
    %4 = vector.shape_cast %1 : vector<8x8x8xf32> to vector<1x1x8x8x8xf32>
    tpu.vector_store %arg4[%c0_4, %c0_5, %c0_6, %c0_7, %c0_8], %4 {strides = array<i32>} : memref<1x1x8x8x8xf32, #tpu.memory_space<vmem>>, vector<1x1x8x8x8xf32>,
    return
  }
  func.func @transform_0(%arg0: i32, %arg1: i32, %arg2: i32) -> (i32, i32, i32, i32, i32) {
    %c0_i32 = arith.constant 0 : i32
    %c0_i32_0 = arith.constant 0 : i32
    %c0_i32_1 = arith.constant 0 : i32
    return %arg2, %arg0, %arg1, %c0_i32, %c0_i32_0 : i32, i32, i32, i32, i32
  }
  func.func @transform_1(%arg0: i32, %arg1: i32, %arg2: i32) -> (i32, i32, i32, i32, i32) {
    %c0_i32 = arith.constant 0 : i32
    %c0_i32_0 = arith.constant 0 : i32
    %c0_i32_1 = arith.constant 0 : i32
    return %arg0, %arg1, %arg2, %c0_i32, %c0_i32_0 : i32, i32, i32, i32, i32
  }
}

</mosaic_0001>

<llo_original>
// kernel: downsample_group_stack.1
$region0: #{downsample_group_stack.1}
  #allocation0 [shape = 'u32[]', space=smem, size = 0x4, offset = 0x4, fixed_abs, tag = 'smem constant byte address 0x4 - core index']
  #allocation1 [shape = 'u32[144,128]{1,0:T(1,128)}', space=vmem, size = 0x12000, scoped, tag = 'internal scratch']
  %s0 = inlined_call_operand.vmem [shape: f32[8,2,2,8,8], index: 0, kind: input, shape index: {}]
  %s1 = inlined_call_operand.vmem [shape: f32[2,2,8,8,8], index: 1, kind: output, shape index: {}]
  %s2 = sld [smem:[#allocation0]]
  $region75: #{downsample_group_stack.1} parent=0
    _
  %s4 = ssub.s32 1, %s2
  %s5 = scalar_select 0, %s4, %s2
  $region1: #{downsample_group_stack.1} parent=0
    #allocation2 [shape = 'u8[65536]{0}', space=vmem, size = 0x10000, scoped, tag = 'input window, operand 0']
    loop: start=0, step=1, limit=6
    $region2: #{downsample_group_stack.1} parent=1 // loop_pre_header
      _
    $region3: #{downsample_group_stack.1} parent=1 // loop_header
      %s7 = sphi 0, %s11
      %p8 = scmp.ge.s32.totalorder %s7, 6
      %s14 = sphi 0, %s33
      %s15 = sphi 0, %s29
      %s16 = sphi 0, %s25
      %s17 = sphi 0, %s14
      %s18 = sphi 0, %s15
      %s19 = sphi 0, %s16
      %s20 = sphi 0, %s17
      %s21 = sphi 0, %s18
      %s22 = sphi 0, %s19
      %s40 = sphi 0, %s42
      %s43 = sphi 0, %s40
      %s44 = sphi 0, %s43
      %s60 = sphi 0, %s44
      %s70 = sphi 0, %s72
      %s73 = sphi 0, %s70
      %s74 = sphi 0, %s73
      %s90 = sphi 0, %s74
    $region4: #{downsample_group_stack.1} parent=1 // loop_header_branch
      %10 = sbr.rel (%p8) target = $region8
    $region5: #{downsample_group_stack.1} parent=1 // loop_body
      %s12 = ssub.s32 %s7, 1
      %s13 = ssub.s32 %s7, 2
      %s23 = sadd.s32 1, %s16
      %p24 = scmp.ge.s32.totalorder %s23, 1
      %s25 = scalar_select %p24, 0, %s23
      %s26 = sadd.s32 1, %s15
      %s27 = scalar_select %p24, %s26, %s15
      %p28 = scmp.ge.s32.totalorder %s27, 2
      %s29 = scalar_select %p28, 0, %s27
      %s30 = sadd.s32 1, %s14
      %s31 = scalar_select %p28, %s30, %s14
      %p32 = scmp.ge.s32.totalorder %s31, 2
      %s33 = scalar_select %p32, 0, %s31
      %s34 = ssub.s32 %s16, %s25
      %s35 = ssub.s32 %s14, %s33
      %s36 = sor.u32 %s34, %s35
      %s37 = ssub.s32 %s15, %s29
      %s38 = sor.u32 %s36, %s37
      %p39 = scmp.eq.s32.totalorder %s38, 0
      %s41 = sadd.s32 %s40, 1
      %s42 = scalar_select %p39, %s40, %s41
      %p45 = pneg %p39
      %p46 = scmp.eq.s32.totalorder %s7, 3
      %p47 = por %p45, %p46
      %p48 = scmp.ne.s32.totalorder %s40, %s43
      %p49 = scmp.eq.s32.totalorder %s7, 0
      %p50 = por %p48, %p49
      %p51 = scmp.ne.s32.totalorder %s40, %s43
      %p52 = scmp.eq.s32.totalorder %s12, 3
      %p53 = por %p51, %p52
      %p54 = scmp.ne.s32.totalorder %s43, %s44
      %p55 = scmp.eq.s32.totalorder %s12, 0
      %p56 = por %p54, %p55
      %p57 = scmp.ne.s32.totalorder %s43, %s44
      %p58 = scmp.eq.s32.totalorder %s13, 3
      %p59 = por %p57, %p58
      %p61 = scmp.ne.s32.totalorder %s44, %s60
      %p62 = scmp.eq.s32.totalorder %s13, 0
      %p63 = por %p61, %p62
      %s64 = ssub.s32 %s14, %s33
      %s65 = ssub.s32 %s15, %s29
      %s66 = sor.u32 %s64, %s65
      %s67 = ssub.s32 %s16, %s25
      %s68 = sor.u32 %s66, %s67
      %p69 = scmp.eq.s32.totalorder %s68, 0
      %s71 = sadd.s32 %s70, 1
      %s72 = scalar_select %p69, %s70, %s71
      %p75 = pneg %p69
      %p76 = scmp.eq.s32.totalorder %s7, 3
      %p77 = por %p75, %p76
      %p78 = scmp.ne.s32.totalorder %s70, %s73
      %p79 = scmp.eq.s32.totalorder %s7, 0
      %p80 = por %p78, %p79
      %p81 = scmp.ne.s32.totalorder %s70, %s73
      %p82 = scmp.eq.s32.totalorder %s12, 3
      %p83 = por %p81, %p82
      %p84 = scmp.ne.s32.totalorder %s73, %s74
      %p85 = scmp.eq.s32.totalorder %s12, 0
      %p86 = por %p84, %p85
      %p87 = scmp.ne.s32.totalorder %s73, %s74
      %p88 = scmp.eq.s32.totalorder %s13, 3
      %p89 = por %p87, %p88
      %p91 = scmp.ne.s32.totalorder %s74, %s90
      %p92 = scmp.eq.s32.totalorder %s13, 0
      %p93 = por %p91, %p92
      %p94 = scmp.le.s32.totalorder 1, %s7
      %p95 = scmp.lt.s32.totalorder %s7, 5
      %p96 = pnand %p94, %p95
      %p97 = pneg %p96
      // Predicated region
      $region9: #{downsample_group_stack.1} parent=5 // pred_check
        _
      $region10: #{downsample_group_stack.1} parent=5 // pred_check_branch
        %99 = sbr.rel (%p96) target = $region12
      $region11: #{downsample_group_stack.1} parent=5 // pred_region
        %s100 = ssub.s32 %s7, 1
      $region12: #{downsample_group_stack.1} parent=5 // pred_fallthru
        _
      %p101 = scmp.lt.s32.totalorder %s7, 4
      // Predicated region
      $region13: #{downsample_group_stack.1} parent=5 // pred_check
        %p102 = pneg %p101
      $region14: #{downsample_group_stack.1} parent=5 // pred_check_branch
        %104 = sbr.rel (%p102) target = $region16
      $region15: #{downsample_group_stack.1} parent=5 // pred_region
        // Predicated region
        $region17: #{downsample_group_stack.1} parent=15 // pred_check
          %p105 = pneg %p50
        $region18: #{downsample_group_stack.1} parent=15 // pred_check_branch
          %107 = sbr.rel (%p105) target = $region20
        $region19: #{downsample_group_stack.1} parent=15 // pred_region
          %s108 = sand.u32 %s40, 1
          %s109 = sand.u32 %s40, 1
          %s110 = smul.addr %s109, 64
          %s111 = scalar_lea.vmem [#allocation2], %s110
          %s112 = smul.u32 8, %s16
          %s113 = smul.addr %s14, 2
          %s114 = sadd.s32 %s15, %s113
          %s115 = smul.addr %s112, 4
          %s116 = sadd.s32 %s114, %s115
          %s117 = smul.addr %s116, 8
          %s118 = scalar_lea.vmem %s0, %s117
          // Predicated region
          $region21: #{downsample_group_stack.1} parent=19 // pred_check
            _
          $region22: #{downsample_group_stack.1} parent=19 // pred_check_branch
            %120 = sbr.rel (0) target = $region24
          $region23: #{downsample_group_stack.1} parent=19 // pred_region
            // Predicated region
            $region25: #{downsample_group_stack.1} parent=23 // pred_check
              _
            $region26: #{downsample_group_stack.1} parent=23 // pred_check_branch
              %122 = sbr.rel (0) target = $region28
            $region27: #{downsample_group_stack.1} parent=23 // pred_region
              // Predicated region
              $region40: #{downsample_group_stack.1} parent=27 // pred_check
                _
              $region41: #{downsample_group_stack.1} parent=27 // pred_check_branch
                %151 = sbr.rel (0) target = $region43
              $region42: #{downsample_group_stack.1} parent=27 // pred_region
                loop: start=0, step=1, limit=1
                $region44: #{downsample_group_stack.1} parent=42 // loop_pre_header
                  _
                $region45: #{downsample_group_stack.1} parent=42 // loop_header
                  %s153 = sphi 0, %s157
                  %p154 = scmp.ge.s32.totalorder %s153, 1
                  %s158 = sphi %s118, %s118
                  %s159 = sphi %s111, %s111
                $region46: #{downsample_group_stack.1} parent=42 // loop_header_branch
                  %156 = sbr.rel (%p154) target = $region50
                $region47: #{downsample_group_stack.1} parent=42 // loop_body
                  %v160 = vld [vmem:[%s158] sm:$0xff]
                  %161 = vst [vmem:[%s159] sm:$0xff] %v160
                  %v162 = vld [vmem:[%s158 + $0x20] sm:$0xff]
                  %163 = vst [vmem:[%s159 + $0x8] sm:$0xff] %v162
                  %v164 = vld [vmem:[%s158 + $0x40] sm:$0xff]
                  %165 = vst [vmem:[%s159 + $0x10] sm:$0xff] %v164
                  %v166 = vld [vmem:[%s158 + $0x60] sm:$0xff]
                  %167 = vst [vmem:[%s159 + $0x18] sm:$0xff] %v166
                  %v168 = vld [vmem:[%s158 + $0x80] sm:$0xff]
                  %169 = vst [vmem:[%s159 + $0x20] sm:$0xff] %v168
                  %v170 = vld [vmem:[%s158 + $0xa0] sm:$0xff]
                  %171 = vst [vmem:[%s159 + $0x28] sm:$0xff] %v170
                  %v172 = vld [vmem:[%s158 + $0xc0] sm:$0xff]
                  %173 = vst [vmem:[%s159 + $0x30] sm:$0xff] %v172
                  %v174 = vld [vmem:[%s158 + $0xe0] sm:$0xff]
                  %175 = vst [vmem:[%s159 + $0x38] sm:$0xff] %v174
                $region48: #{downsample_group_stack.1} parent=42 // loop_footer
                  %s157 = sadd.s32 1, %s153
                $region49: #{downsample_group_stack.1} parent=42 // loop_footer_branch
                  %152 = sbr.rel target = $region45
                $region50: #{downsample_group_stack.1} parent=42 // loop_exit
                  _
              $region43: #{downsample_group_stack.1} parent=27 // pred_fallthru
                _
              // Predicated region
              $region51: #{downsample_group_stack.1} parent=27 // pred_check
                _
              $region52: #{downsample_group_stack.1} parent=27 // pred_check_branch
                %177 = sbr.rel target = $region54
              $region53: #{downsample_group_stack.1} parent=27 // pred_region
                _
              $region54: #{downsample_group_stack.1} parent=27 // pred_fallthru
                _
            $region28: #{downsample_group_stack.1} parent=23 // pred_fallthru
              _
            // Predicated region
            $region29: #{downsample_group_stack.1} parent=23 // pred_check
              _
            $region30: #{downsample_group_stack.1} parent=23 // pred_check_branch
              %124 = sbr.rel target = $region32
            $region31: #{downsample_group_stack.1} parent=23 // pred_region
              loop: start=0, step=1, limit=1
              $region33: #{downsample_group_stack.1} parent=31 // loop_pre_header
                _
              $region34: #{downsample_group_stack.1} parent=31 // loop_header
                %s127 = sphi 0, %s131
                %p128 = scmp.ge.s32.totalorder %s127, 1
                %s132 = sphi %s118, %s118
                %s133 = sphi %s111, %s111
              $region35: #{downsample_group_stack.1} parent=31 // loop_header_branch
                %130 = sbr.rel (%p128) target = $region39
              $region36: #{downsample_group_stack.1} parent=31 // loop_body
                %v134 = vld [vmem:[%s132] sm:$0xff]
                %135 = vst [vmem:[%s133] sm:$0xff] %v134
                %v136 = vld [vmem:[%s132 + $0x20] sm:$0xff]
                %137 = vst [vmem:[%s133 + $0x8] sm:$0xff] %v136
                %v138 = vld [vmem:[%s132 + $0x40] sm:$0xff]
                %139 = vst [vmem:[%s133 + $0x10] sm:$0xff] %v138
                %v140 = vld [vmem:[%s132 + $0x60] sm:$0xff]
                %141 = vst [vmem:[%s133 + $0x18] sm:$0xff] %v140
                %v142 = vld [vmem:[%s132 + $0x80] sm:$0xff]
                %143 = vst [vmem:[%s133 + $0x20] sm:$0xff] %v142
                %v144 = vld [vmem:[%s132 + $0xa0] sm:$0xff]
                %145 = vst [vmem:[%s133 + $0x28] sm:$0xff] %v144
                %v146 = vld [vmem:[%s132 + $0xc0] sm:$0xff]
                %147 = vst [vmem:[%s133 + $0x30] sm:$0xff] %v146
                %v148 = vld [vmem:[%s132 + $0xe0] sm:$0xff]
                %149 = vst [vmem:[%s133 + $0x38] sm:$0xff] %v148
              $region37: #{downsample_group_stack.1} parent=31 // loop_footer
                %s131 = sadd.s32 1, %s127
              $region38: #{downsample_group_stack.1} parent=31 // loop_footer_branch
                %126 = sbr.rel target = $region34
              $region39: #{downsample_group_stack.1} parent=31 // loop_exit
                _
            $region32: #{downsample_group_stack.1} parent=23 // pred_fallthru
              _
          $region24: #{downsample_group_stack.1} parent=19 // pred_fallthru
            _
          %178 = vnop
        $region20: #{downsample_group_stack.1} parent=15 // pred_fallthru
          _
      $region16: #{downsample_group_stack.1} parent=5 // pred_fallthru
        _
      %p179 = scmp.le.s32.totalorder 1, %s7
      %p180 = scmp.lt.s32.totalorder %s7, 5
      %p181 = pnand %p179, %p180
      %p182 = pneg %p181
      // Predicated region
      $region55: #{downsample_group_stack.1} parent=5 // pred_check
        _
      $region56: #{downsample_group_stack.1} parent=5 // pred_check_branch
        %184 = sbr.rel (%p181) target = $region58
      $region57: #{downsample_group_stack.1} parent=5 // pred_region
        %s185 = ssub.s32 %s7, 1
        %s186 = sand.u32 %s43, 1
        %s187 = sand.u32 %s43, 1
        %s188 = smul.addr %s187, 64
        %s189 = scalar_lea.vmem [#allocation2], %s188
        // Predicated region
        $region59: #{downsample_group_stack.1} parent=57 // pred_check
          %p190 = pneg %p56
        $region60: #{downsample_group_stack.1} parent=57 // pred_check_branch
          %192 = sbr.rel (%p190) target = $region62
        $region61: #{downsample_group_stack.1} parent=57 // pred_region
          _
        $region62: #{downsample_group_stack.1} parent=57 // pred_fallthru
          _
        %s193 = sand.u32 %s43, 1
        %s194 = sand.u32 %s43, 1
        %s195 = smul.addr %s194, 64
        %s196 = scalar_lea.vmem [#allocation2], %s195
        %p197 = pneg %p56
        %p198 = pneg %p53
        %p199 = pneg %p86
        %p200 = pneg %p83
        %s201 = smul.u32 8, %s19
        %p202 = scmp.lt.s32.totalorder %s17, 1
        %s203 = scalar_select %p202, %s17, 1
        %p204 = scmp.lt.s32.totalorder %s18, 1
        %s205 = scalar_select %p204, %s18, 1
        %p206 = scmp.lt.s32.totalorder %s201, 7
        %s207 = scalar_select %p206, %s201, 7
        %s208 = smul.addr %s205, 8
        %s209 = sadd.s32 %s207, %s208
        %s210 = smul.addr %s203, 16
        %s211 = sadd.s32 %s209, %s210
        %s212 = smul.addr %s211, 8
        %s213 = scalar_lea.vmem %s1, %s212
        %s214 = smul.u32 8, %s19
        %s215 = smul.u32 8, %s19
        %p216 = scmp.lt.s32.totalorder %s17, 1
        %s217 = scalar_select %p216, %s17, 1
        %p218 = scmp.lt.s32.totalorder %s18, 1
        %s219 = scalar_select %p218, %s18, 1
        %p220 = scmp.lt.s32.totalorder %s215, 7
        %s221 = scalar_select %p220, %s215, 7
        %s222 = smul.addr %s219, 8
        %s223 = sadd.s32 %s221, %s222
        %s224 = smul.addr %s217, 16
        %s225 = sadd.s32 %s223, %s224
        %s226 = smul.addr %s225, 8
        %s227 = scalar_lea.vmem %s1, %s226
        %s228 = smul.u32 8, %s19
        %v229 = vld [vmem:[%s189] sm:$0xff]
        %v230 = vld [vmem:[%s189 + $0x8] sm:$0xff]
        %v231 = vld [vmem:[%s189 + $0x10] sm:$0xff]
        %v232 = vld [vmem:[%s189 + $0x18] sm:$0xff]
        %v233 = vld [vmem:[%s189 + $0x20] sm:$0xff]
        %v234 = vld [vmem:[%s189 + $0x28] sm:$0xff]
        %v235 = vld [vmem:[%s189 + $0x30] sm:$0xff]
        %v236 = vld [vmem:[%s189 + $0x38] sm:$0xff]
        %vm237 = vcmask 64512
        %238 = vst.msk [vmem:[%s227] sm:$0xff] %vm237, %v229
        %239 = vst.msk [vmem:[%s227 + $0x8] sm:$0xff] %vm237, %v230
        %240 = vst.msk [vmem:[%s227 + $0x10] sm:$0xff] %vm237, %v231
        %241 = vst.msk [vmem:[%s227 + $0x18] sm:$0xff] %vm237, %v232
        %242 = vst.msk [vmem:[%s227 + $0x20] sm:$0xff] %vm237, %v233
        %243 = vst.msk [vmem:[%s227 + $0x28] sm:$0xff] %vm237, %v234
        %244 = vst.msk [vmem:[%s227 + $0x30] sm:$0xff] %vm237, %v235
        %245 = vst.msk [vmem:[%s227 + $0x38] sm:$0xff] %vm237, %v236
        %s246 = smul.u32 8, %s19
        %p247 = scmp.lt.s32.totalorder %s17, 1
        %s248 = scalar_select %p247, %s17, 1
        %p249 = scmp.lt.s32.totalorder %s18, 1
        %s250 = scalar_select %p249, %s18, 1
        %p251 = scmp.lt.s32.totalorder %s246, 7
        %s252 = scalar_select %p251, %s246, 7
        %s253 = smul.addr %s250, 8
        %s254 = sadd.s32 %s252, %s253
        %s255 = smul.addr %s248, 16
        %s256 = sadd.s32 %s254, %s255
        %s257 = smul.addr %s256, 8
        %s258 = scalar_lea.vmem %s1, %s257
        // Predicated region
        $region63: #{downsample_group_stack.1} parent=57 // pred_check
          %p259 = pneg %p83
        $region64: #{downsample_group_stack.1} parent=57 // pred_check_branch
          %261 = sbr.rel (%p259) target = $region66
        $region65: #{downsample_group_stack.1} parent=57 // pred_region
          %s262 = smul.u32 8, %s19
        $region66: #{downsample_group_stack.1} parent=57 // pred_fallthru
          _
      $region58: #{downsample_group_stack.1} parent=5 // pred_fallthru
        _
      %p263 = scmp.le.s32.totalorder 2, %s7
      // Predicated region
      $region67: #{downsample_group_stack.1} parent=5 // pred_check
        %p264 = pneg %p263
      $region68: #{downsample_group_stack.1} parent=5 // pred_check_branch
        %266 = sbr.rel (%p264) target = $region70
      $region69: #{downsample_group_stack.1} parent=5 // pred_region
        %s267 = ssub.s32 %s7, 2
        // Predicated region
        $region71: #{downsample_group_stack.1} parent=69 // pred_check
          %p268 = pneg %p89
        $region72: #{downsample_group_stack.1} parent=69 // pred_check_branch
          %270 = sbr.rel (%p268) target = $region74
        $region73: #{downsample_group_stack.1} parent=69 // pred_region
          %s271 = smul.u32 8, %s22
          %p272 = scmp.lt.s32.totalorder %s20, 1
          %s273 = scalar_select %p272, %s20, 1
          %p274 = scmp.lt.s32.totalorder %s21, 1
          %s275 = scalar_select %p274, %s21, 1
          %p276 = scmp.lt.s32.totalorder %s271, 7
          %s277 = scalar_select %p276, %s271, 7
          %s278 = smul.addr %s275, 8
          %s279 = sadd.s32 %s277, %s278
          %s280 = smul.addr %s273, 16
          %s281 = sadd.s32 %s279, %s280
          %s282 = smul.addr %s281, 8
          %s283 = scalar_lea.vmem %s1, %s282
        $region74: #{downsample_group_stack.1} parent=69 // pred_fallthru
          _
      $region70: #{downsample_group_stack.1} parent=5 // pred_fallthru
        _
    $region6: #{downsample_group_stack.1} parent=1 // loop_footer
      %s11 = sadd.s32 1, %s7
    $region7: #{downsample_group_stack.1} parent=1 // loop_footer_branch
      %6 = sbr.rel target = $region3
    $region8: #{downsample_group_stack.1} parent=1 // loop_exit
      _

</llo_original>
